<compile_context>
chip_gen: v7x
topology: tpu7x:2x2x1
jax: 0.10.0
libtpu: 0.0.40
codegen_flags: <defaults>
</compile_context>

<pallas_src>
import functools

import jax
import jax.numpy as jnp
from jax.experimental import pallas as pl
from jax.experimental.pallas import tpu as pltpu


def _round_up(x, m):
    return ((x + m - 1) // m) * m


def _fc_actor_kernel(x_ref,
                     w1_ref, b1_ref,
                     w2_ref, b2_ref,
                     w3_ref, b3_ref,
                     wo_ref, bo_ref,
                     mu_ref):
    # Hidden layer 1: Linear + (Dropout=id) + ReLU.
    # x is f32 in HBM/VMEM; cast to bf16 in-kernel right before the MXU dot.
    h = jnp.dot(x_ref[...].astype(jnp.bfloat16), w1_ref[...],
                preferred_element_type=jnp.float32)
    h = jnp.maximum(h + b1_ref[...], 0.0)
    # Hidden layer 2
    h = jnp.dot(h.astype(jnp.bfloat16), w2_ref[...],
                preferred_element_type=jnp.float32)
    h = jnp.maximum(h + b2_ref[...], 0.0)
    # Hidden layer 3
    h = jnp.dot(h.astype(jnp.bfloat16), w3_ref[...],
                preferred_element_type=jnp.float32)
    h = jnp.maximum(h + b3_ref[...], 0.0)
    # Output head (lane-padded to a multiple of 128): Linear + Tanh.
    # Elementwise path stays f32 (v5e VPU/EUP have no bf16); store is bf16.
    mu = jnp.dot(h.astype(jnp.bfloat16), wo_ref[...],
                 preferred_element_type=jnp.float32)
    mu_ref[...] = jnp.tanh(mu + bo_ref[...]).astype(mu_ref.dtype)


def prepare_params(params):
    """One-time parameter conversion (call once, outside the hot loop).

    Casts weights to bf16 (MXU-native) and zero-pads the output head to a
    lane-dense multiple of 128. Biases stay f32.
    Returns (prepped_params_dict, action_dim).
    """
    hidden = params["w1"].shape[1]
    action_dim = params["wo"].shape[1]
    out_pad = _round_up(max(action_dim, 128), 128)

    wo = jnp.zeros((hidden, out_pad), jnp.bfloat16)
    wo = wo.at[:, :action_dim].set(params["wo"].astype(jnp.bfloat16))
    bo = jnp.zeros((1, out_pad), jnp.float32)
    bo = bo.at[:, :action_dim].set(params["bo"])

    prepped = {
        "w1": params["w1"].astype(jnp.bfloat16), "b1": params["b1"],
        "w2": params["w2"].astype(jnp.bfloat16), "b2": params["b2"],
        "w3": params["w3"].astype(jnp.bfloat16), "b3": params["b3"],
        "wo": wo, "bo": bo,
    }
    return jax.device_put(prepped), action_dim


@functools.partial(jax.jit, static_argnames=("action_dim", "block_b"))
def fc_actor_forward(x, params, action_dim, *, block_b=512):
    """Runs the full FcActor MLP inside one Pallas call.

    x:          [B, in_dim] float32 (raw observations; NOT pre-cast)
    params:     output of prepare_params() (bf16 weights, padded head)
    action_dim: number of real output lanes (static)
    returns mu: [B, action_dim] float32
    """
    B, in_dim = x.shape
    hidden = params["w1"].shape[1]
    out_pad = params["wo"].shape[1]

    # --- batch tiling (no input padding / copies) ---------------------------
    # Partial last block is handled by Pallas boundary masking: out-of-range
    # input rows produce garbage rows that are row-local and discarded on the
    # masked output store, so valid rows are unaffected (rows independent).
    if B >= 32:
        # >=2 grid steps so both v7x TensorCores get work; tb multiple of 16
        # keeps the bf16 output block cleanly sublane-packed.
        tb = min(block_b, _round_up(pl.cdiv(B, 2), 16))
        grid = (pl.cdiv(B, tb),)
    else:
        tb = B                      # tiny batch: one block covering all of it
        grid = (1,)

    def weight_spec(shape):
        # Full block, invariant across the batch grid axis -> VMEM-resident.
        return pl.BlockSpec(shape, lambda i: (0, 0))

    w1, b1 = params["w1"], params["b1"]
    w2, b2 = params["w2"], params["b2"]
    w3, b3 = params["w3"], params["b3"]
    wo, bo = params["wo"], params["bo"]

    in_specs = [
        pl.BlockSpec((tb, in_dim), lambda i: (i, 0)),   # x: batch-tiled, f32
        weight_spec(w1.shape), weight_spec(b1.shape),
        weight_spec(w2.shape), weight_spec(b2.shape),
        weight_spec(w3.shape), weight_spec(b3.shape),
        weight_spec(wo.shape), weight_spec(bo.shape),
    ]
    out_specs = pl.BlockSpec((tb, out_pad), lambda i: (i, 0))

    flops = 2 * B * (in_dim * hidden + 2 * hidden * hidden + hidden * out_pad)
    bytes_accessed = (
        B * in_dim * 4                                        # x (f32 in)
        + (w1.size + w2.size + w3.size + wo.size) * 2         # bf16 weights
        + (b1.size + b2.size + b3.size + bo.size) * 4         # f32 biases
        + B * out_pad * 2)                                    # bf16 out

    mu_padded = pl.pallas_call(
        _fc_actor_kernel,
        out_shape=jax.ShapeDtypeStruct((B, out_pad), jnp.bfloat16),
        grid=grid,
        in_specs=in_specs,
        out_specs=out_specs,
        compiler_params=pltpu.CompilerParams(
            dimension_semantics=("parallel",)),
        cost_estimate=pl.CostEstimate(
            flops=flops,
            bytes_accessed=bytes_accessed,
            transcendentals=B * out_pad),
    )(x, w1, b1, w2, b2, w3, b3, wo, bo)

    return mu_padded[:, :action_dim].astype(jnp.float32)


def init_params(key, in_dim, hidden_dim, action_dim, num_layer=3):
    """Deterministic PyTorch-style (uniform +-1/sqrt(fan_in)) init."""
    dims = [in_dim] + [hidden_dim] * num_layer + [action_dim]
    names = ["1", "2", "3", "o"]
    params = {}
    keys = jax.random.split(key, 2 * len(names))
    for i, n in enumerate(names):
        fan_in, fan_out = dims[i], dims[i + 1]
        bound = 1.0 / jnp.sqrt(jnp.float32(fan_in))
        params[f"w{n}"] = jax.random.uniform(
            keys[2 * i], (fan_in, fan_out), jnp.float32, -bound, bound)
        params[f"b{n}"] = jax.random.uniform(
            keys[2 * i + 1], (1, fan_out), jnp.float32, -bound, bound)
    return params


def fc_actor_reference(x, params):
    """Pure-f32 JAX reference (matches the PyTorch eval-mode forward)."""
    h = jnp.maximum(x @ params["w1"] + params["b1"], 0.0)
    h = jnp.maximum(h @ params["w2"] + params["b2"], 0.0)
    h = jnp.maximum(h @ params["w3"] + params["b3"], 0.0)
    return jnp.tanh(h @ params["wo"] + params["bo"])


if __name__ == "__main__":
    # Small shapes consistent with FcActor: obs_shape=(32,), hidden=128,
    # num_layer=3, action_dim=8, batch=8.
    B, IN_DIM, HIDDEN, ACTION_DIM = 8, 32, 128, 8

    key = jax.random.PRNGKey(0)
    k_obs, k_params = jax.random.split(key)
    obs_state = jax.random.normal(k_obs, (B, IN_DIM), jnp.float32)
    params = init_params(k_params, IN_DIM, HIDDEN, ACTION_DIM, num_layer=3)

    std = 0.01  # TruncatedNormal scale — passed through, not a tensor op.

    # One-time weight prep (bf16 cast + head padding) hoisted out of forward.
    prepped, action_dim = prepare_params(params)

    mu = fc_actor_forward(obs_state, prepped, action_dim)
    mu = jax.block_until_ready(mu)

    mu_ref = fc_actor_reference(obs_state, params)
    assert mu.shape == (B, ACTION_DIM)
    assert mu.dtype == jnp.float32
    # bf16 weights/activations/output -> loosened tolerance vs the f32 ref.
    assert jnp.allclose(mu, mu_ref, atol=3e-2, rtol=3e-2), (
        float(jnp.max(jnp.abs(mu - mu_ref))))

    print("KERNEL_OK")
</pallas_src>

<mosaic_0001>
module attributes {stable_mosaic.version = 11 : i64} {
  func.func @_fc_actor_kernel(%arg0: i32, %arg1: memref<8x32xf32, #tpu.memory_space<vmem>>, %arg2: memref<32x128xbf16, #tpu.memory_space<vmem>>, %arg3: memref<1x128xf32, #tpu.memory_space<vmem>>, %arg4: memref<128x128xbf16, #tpu.memory_space<vmem>>, %arg5: memref<1x128xf32, #tpu.memory_space<vmem>>, %arg6: memref<128x128xbf16, #tpu.memory_space<vmem>>, %arg7: memref<1x128xf32, #tpu.memory_space<vmem>>, %arg8: memref<128x128xbf16, #tpu.memory_space<vmem>>, %arg9: memref<1x128xf32, #tpu.memory_space<vmem>>, %arg10: memref<8x128xbf16, #tpu.memory_space<vmem>>) attributes {dimension_semantics = [#tpu.dimension_semantics<parallel>], iteration_bounds = array<i64: 1>, scalar_prefetch = 0 : i64, scratch_operands = 0 : i64, tpu.core_type = #tpu.core_type<tc>, window_params = [{transform_indices = @transform_0, window_bounds = array<i64: 8, 32>}, {pipeline_mode = #tpu.pipeline_mode<synchronous>, transform_indices = @transform_1, window_bounds = array<i64: 32, 128>}, {pipeline_mode = #tpu.pipeline_mode<synchronous>, transform_indices = @transform_2, window_bounds = array<i64: 1, 128>}, {pipeline_mode = #tpu.pipeline_mode<synchronous>, transform_indices = @transform_3, window_bounds = array<i64: 128, 128>}, {pipeline_mode = #tpu.pipeline_mode<synchronous>, transform_indices = @transform_4, window_bounds = array<i64: 1, 128>}, {pipeline_mode = #tpu.pipeline_mode<synchronous>, transform_indices = @transform_5, window_bounds = array<i64: 128, 128>}, {pipeline_mode = #tpu.pipeline_mode<synchronous>, transform_indices = @transform_6, window_bounds = array<i64: 1, 128>}, {pipeline_mode = #tpu.pipeline_mode<synchronous>, transform_indices = @transform_7, window_bounds = array<i64: 128, 128>}, {pipeline_mode = #tpu.pipeline_mode<synchronous>, transform_indices = @transform_8, window_bounds = array<i64: 1, 128>}, {transform_indices = @transform_9, window_bounds = array<i64: 8, 128>}]} {
    %c0 = arith.constant 0 : index
    %c0_0 = arith.constant 0 : index
    %0 = vector.load %arg1[%c0, %c0_0] : memref<8x32xf32, #tpu.memory_space<vmem>>, vector<8x32xf32>
    %1 = arith.truncf %0 : vector<8x32xf32> to vector<8x32xbf16>
    %c0_1 = arith.constant 0 : index
    %c0_2 = arith.constant 0 : index
    %2 = vector.load %arg2[%c0_1, %c0_2] : memref<32x128xbf16, #tpu.memory_space<vmem>>, vector<32x128xbf16>
    %cst = arith.constant dense<0.000000e+00> : vector<8x128xf32>
    %3 = tpu.matmul %1, %2, %cst {dimension_numbers = #tpu.dot_dimension_numbers<[1], [0], [0], [1], [0, 0, 1, 1], [], []>} : vector<8x32xbf16>, vector<32x128xbf16>, vector<8x128xf32> -> vector<8x128xf32>
    %c0_3 = arith.constant 0 : index
    %c0_4 = arith.constant 0 : index
    %4 = vector.load %arg3[%c0_3, %c0_4] : memref<1x128xf32, #tpu.memory_space<vmem>>, vector<1x128xf32>
    %5 = vector.broadcast %4 : vector<1x128xf32> to vector<8x128xf32>
    %6 = arith.addf %3, %5 : vector<8x128xf32>
    %cst_5 = arith.constant 0.000000e+00 : f32
    %7 = vector.broadcast %cst_5 : f32 to vector<8x128xf32>
    %8 = arith.maximumf %6, %7 : vector<8x128xf32>
    %9 = arith.truncf %8 : vector<8x128xf32> to vector<8x128xbf16>
    %c0_6 = arith.constant 0 : index
    %c0_7 = arith.constant 0 : index
    %10 = vector.load %arg4[%c0_6, %c0_7] : memref<128x128xbf16, #tpu.memory_space<vmem>>, vector<128x128xbf16>
    %cst_8 = arith.constant dense<0.000000e+00> : vector<8x128xf32>
    %11 = tpu.matmul %9, %10, %cst_8 {dimension_numbers = #tpu.dot_dimension_numbers<[1], [0], [0], [1], [0, 0, 1, 1], [], []>} : vector<8x128xbf16>, vector<128x128xbf16>, vector<8x128xf32> -> vector<8x128xf32>
    %c0_9 = arith.constant 0 : index
    %c0_10 = arith.constant 0 : index
    %12 = vector.load %arg5[%c0_9, %c0_10] : memref<1x128xf32, #tpu.memory_space<vmem>>, vector<1x128xf32>
    %13 = vector.broadcast %12 : vector<1x128xf32> to vector<8x128xf32>
    %14 = arith.addf %11, %13 : vector<8x128xf32>
    %cst_11 = arith.constant 0.000000e+00 : f32
    %15 = vector.broadcast %cst_11 : f32 to vector<8x128xf32>
    %16 = arith.maximumf %14, %15 : vector<8x128xf32>
    %17 = arith.truncf %16 : vector<8x128xf32> to vector<8x128xbf16>
    %c0_12 = arith.constant 0 : index
    %c0_13 = arith.constant 0 : index
    %18 = vector.load %arg6[%c0_12, %c0_13] : memref<128x128xbf16, #tpu.memory_space<vmem>>, vector<128x128xbf16>
    %cst_14 = arith.constant dense<0.000000e+00> : vector<8x128xf32>
    %19 = tpu.matmul %17, %18, %cst_14 {dimension_numbers = #tpu.dot_dimension_numbers<[1], [0], [0], [1], [0, 0, 1, 1], [], []>} : vector<8x128xbf16>, vector<128x128xbf16>, vector<8x128xf32> -> vector<8x128xf32>
    %c0_15 = arith.constant 0 : index
    %c0_16 = arith.constant 0 : index
    %20 = vector.load %arg7[%c0_15, %c0_16] : memref<1x128xf32, #tpu.memory_space<vmem>>, vector<1x128xf32>
    %21 = vector.broadcast %20 : vector<1x128xf32> to vector<8x128xf32>
    %22 = arith.addf %19, %21 : vector<8x128xf32>
    %cst_17 = arith.constant 0.000000e+00 : f32
    %23 = vector.broadcast %cst_17 : f32 to vector<8x128xf32>
    %24 = arith.maximumf %22, %23 : vector<8x128xf32>
    %25 = arith.truncf %24 : vector<8x128xf32> to vector<8x128xbf16>
    %c0_18 = arith.constant 0 : index
    %c0_19 = arith.constant 0 : index
    %26 = vector.load %arg8[%c0_18, %c0_19] : memref<128x128xbf16, #tpu.memory_space<vmem>>, vector<128x128xbf16>
    %cst_20 = arith.constant dense<0.000000e+00> : vector<8x128xf32>
    %27 = tpu.matmul %25, %26, %cst_20 {dimension_numbers = #tpu.dot_dimension_numbers<[1], [0], [0], [1], [0, 0, 1, 1], [], []>} : vector<8x128xbf16>, vector<128x128xbf16>, vector<8x128xf32> -> vector<8x128xf32>
    %c0_21 = arith.constant 0 : index
    %c0_22 = arith.constant 0 : index
    %28 = vector.load %arg9[%c0_21, %c0_22] : memref<1x128xf32, #tpu.memory_space<vmem>>, vector<1x128xf32>
    %29 = vector.broadcast %28 : vector<1x128xf32> to vector<8x128xf32>
    %30 = arith.addf %27, %29 : vector<8x128xf32>
    %31 = math.tanh %30 : vector<8x128xf32>
    %32 = arith.truncf %31 : vector<8x128xf32> to vector<8x128xbf16>
    %c0_23 = arith.constant 0 : index
    %c0_24 = arith.constant 0 : index
    %33 = vector.load %arg10[%c0_23, %c0_24] : memref<8x128xbf16, #tpu.memory_space<vmem>>, vector<8x128xbf16>
    tpu.vector_store %arg10[%c0_23, %c0_24], %32 {strides = array<i32>} : memref<8x128xbf16, #tpu.memory_space<vmem>>, vector<8x128xbf16>,
    return
  }
  func.func @transform_0(%arg0: i32) -> (i32, i32) {
    %c0_i32 = arith.constant 0 : i32
    %c0_i32_0 = arith.constant 0 : i32
    return %arg0, %c0_i32 : i32, i32
  }
  func.func @transform_1(%arg0: i32) -> (i32, i32) {
    %c0_i32 = arith.constant 0 : i32
    %c0_i32_0 = arith.constant 0 : i32
    %c0_i32_1 = arith.constant 0 : i32
    return %c0_i32, %c0_i32_0 : i32, i32
  }
  func.func @transform_2(%arg0: i32) -> (i32, i32) {
    %c0_i32 = arith.constant 0 : i32
    %c0_i32_0 = arith.constant 0 : i32
    %c0_i32_1 = arith.constant 0 : i32
    return %c0_i32, %c0_i32_0 : i32, i32
  }
  func.func @transform_3(%arg0: i32) -> (i32, i32) {
    %c0_i32 = arith.constant 0 : i32
    %c0_i32_0 = arith.constant 0 : i32
    %c0_i32_1 = arith.constant 0 : i32
    return %c0_i32, %c0_i32_0 : i32, i32
  }
  func.func @transform_4(%arg0: i32) -> (i32, i32) {
    %c0_i32 = arith.constant 0 : i32
    %c0_i32_0 = arith.constant 0 : i32
    %c0_i32_1 = arith.constant 0 : i32
    return %c0_i32, %c0_i32_0 : i32, i32
  }
  func.func @transform_5(%arg0: i32) -> (i32, i32) {
    %c0_i32 = arith.constant 0 : i32
    %c0_i32_0 = arith.constant 0 : i32
    %c0_i32_1 = arith.constant 0 : i32
    return %c0_i32, %c0_i32_0 : i32, i32
  }
  func.func @transform_6(%arg0: i32) -> (i32, i32) {
    %c0_i32 = arith.constant 0 : i32
    %c0_i32_0 = arith.constant 0 : i32
    %c0_i32_1 = arith.constant 0 : i32
    return %c0_i32, %c0_i32_0 : i32, i32
  }
  func.func @transform_7(%arg0: i32) -> (i32, i32) {
    %c0_i32 = arith.constant 0 : i32
    %c0_i32_0 = arith.constant 0 : i32
    %c0_i32_1 = arith.constant 0 : i32
    return %c0_i32, %c0_i32_0 : i32, i32
  }
  func.func @transform_8(%arg0: i32) -> (i32, i32) {
    %c0_i32 = arith.constant 0 : i32
    %c0_i32_0 = arith.constant 0 : i32
    %c0_i32_1 = arith.constant 0 : i32
    return %c0_i32, %c0_i32_0 : i32, i32
  }
  func.func @transform_9(%arg0: i32) -> (i32, i32) {
    %c0_i32 = arith.constant 0 : i32
    %c0_i32_0 = arith.constant 0 : i32
    return %arg0, %c0_i32 : i32, i32
  }
}

</mosaic_0001>

<llo_original>
// kernel: fc_actor_forward.1
$region0: #{fc_actor_forward.1}
  #allocation0 [shape = 'u32[]', space=smem, size = 0x4, offset = 0x4, fixed_abs, tag = 'smem constant byte address 0x4 - core index']
  #allocation1 [shape = 'u32[144,128]{1,0:T(1,128)}', space=vmem, size = 0x12000, scoped, tag = 'internal scratch']
  %s0 = inlined_call_operand.hbm [shape: f32[8,32], index: 0, kind: input, shape index: {}]
  %s1 = inlined_call_operand.vmem [shape: bf16[32,128], index: 1, kind: input, shape index: {}]
  %s2 = inlined_call_operand.vmem [shape: f32[1,128], index: 2, kind: input, shape index: {}]
  %s3 = inlined_call_operand.hbm [shape: bf16[128,128], index: 3, kind: input, shape index: {}]
  %s4 = inlined_call_operand.vmem [shape: f32[1,128], index: 4, kind: input, shape index: {}]
  %s5 = inlined_call_operand.hbm [shape: bf16[128,128], index: 5, kind: input, shape index: {}]
  %s6 = inlined_call_operand.hbm [shape: f32[1,128], index: 6, kind: input, shape index: {}]
  %s7 = inlined_call_operand.hbm [shape: bf16[128,128], index: 7, kind: input, shape index: {}]
  %s8 = inlined_call_operand.hbm [shape: f32[1,128], index: 8, kind: input, shape index: {}]
  %s9 = inlined_call_operand.vmem [shape: bf16[8,128], index: 9, kind: output, shape index: {}]
  %s10 = sld [smem:[#allocation0]]
  $region70: #{fc_actor_forward.1} parent=0
    _
  %s12 = ssub.s32 1, %s10
  %s13 = scalar_select 0, %s12, %s10
  $region1: #{fc_actor_forward.1} parent=0
    #allocation2 [shape = 'u8[4096]{0}', space=vmem, size = 0x1000, scoped, tag = 'input window, operand 0, single buffered']
    #allocation3 [shape = 's32[1]{0}', space=sflag, size = 0x4, scoped, tag = 'scoped memory for fc_actor_forward.1']
    #allocation4 [shape = 'u8[32768]{0}', space=vmem, size = 0x8000, scoped, tag = 'input window, operand 3, single buffered']
    #allocation5 [shape = 's32[1]{0}', space=sflag, size = 0x4, scoped, tag = 'scoped memory for fc_actor_forward.1']
    #allocation6 [shape = 'u8[32768]{0}', space=vmem, size = 0x8000, scoped, tag = 'input window, operand 5, single buffered']
    #allocation7 [shape = 'u8[512]{0}', space=vmem, size = 0x400, scoped, tag = 'input window, operand 6, single buffered']
    #allocation8 [shape = 's32[1]{0}', space=sflag, size = 0x4, scoped, tag = 'scoped memory for fc_actor_forward.1']
    #allocation9 [shape = 'u8[32768]{0}', space=vmem, size = 0x8000, scoped, tag = 'input window, operand 7, single buffered']
    #allocation10 [shape = 'u8[512]{0}', space=vmem, size = 0x400, scoped, tag = 'input window, operand 8, single buffered']
    #allocation11 [shape = 's32[1]{0}', space=sflag, size = 0x4, scoped, tag = 'scoped memory for fc_actor_forward.1']
    %14 = vsyncpa [#allocation3], 0
    %15 = vsyncpa [#allocation5], 0
    %16 = vsyncpa [#allocation8], 0
    %17 = vsyncpa [#allocation11], 0
    // Predicated region
    $region2: #{fc_actor_forward.1} parent=1 // pred_check
      _
    $region3: #{fc_actor_forward.1} parent=1 // pred_check_branch
      %19 = sbr.rel (0) target = $region5
    $region4: #{fc_actor_forward.1} parent=1 // pred_region
      %s21 = ssub.s32 128, 128
      %22 = vsyncadd [#allocation3], %s21
      %s24 = sshll.u32 [#allocation2], 4
      %s25 = int_to_ptr.vmem [resolvable:$true] %s24
      %27 = dma.hbm_to_vmem [thread:$0]  %s0, 128, %s25, [#allocation3]
    $region5: #{fc_actor_forward.1} parent=1 // pred_fallthru
      _
    // Predicated region
    $region6: #{fc_actor_forward.1} parent=1 // pred_check
      _
    $region7: #{fc_actor_forward.1} parent=1 // pred_check_branch
      %29 = sbr.rel (0) target = $region9
    $region8: #{fc_actor_forward.1} parent=1 // pred_region
      _
    $region9: #{fc_actor_forward.1} parent=1 // pred_fallthru
      _
    // Predicated region
    $region10: #{fc_actor_forward.1} parent=1 // pred_check
      _
    $region11: #{fc_actor_forward.1} parent=1 // pred_check_branch
      %31 = sbr.rel (0) target = $region13
    $region12: #{fc_actor_forward.1} parent=1 // pred_region
      _
    $region13: #{fc_actor_forward.1} parent=1 // pred_fallthru
      _
    // Predicated region
    $region14: #{fc_actor_forward.1} parent=1 // pred_check
      _
    $region15: #{fc_actor_forward.1} parent=1 // pred_check_branch
      %33 = sbr.rel (0) target = $region17
    $region16: #{fc_actor_forward.1} parent=1 // pred_region
      %s35 = ssub.s32 1024, 1024
      %36 = vsyncadd [#allocation5], %s35
      %s37 = sshll.u32 [#allocation4], 4
      %s38 = int_to_ptr.vmem [resolvable:$true] %s37
      %43 = dma.hbm_to_vmem [thread:$0]  %s3, 1024, %s38, [#allocation5], 64, 64, 4
    $region17: #{fc_actor_forward.1} parent=1 // pred_fallthru
      _
    // Predicated region
    $region18: #{fc_actor_forward.1} parent=1 // pred_check
      _
    $region19: #{fc_actor_forward.1} parent=1 // pred_check_branch
      %45 = sbr.rel (0) target = $region21
    $region20: #{fc_actor_forward.1} parent=1 // pred_region
      _
    $region21: #{fc_actor_forward.1} parent=1 // pred_fallthru
      _
    // Predicated region
    $region22: #{fc_actor_forward.1} parent=1 // pred_check
      _
    $region23: #{fc_actor_forward.1} parent=1 // pred_check_branch
      %47 = sbr.rel (0) target = $region25
    $region24: #{fc_actor_forward.1} parent=1 // pred_region
      %s49 = ssub.s32 1024, 1024
      %50 = vsyncadd [#allocation5], %s49
      %s51 = sshll.u32 [#allocation6], 4
      %s52 = int_to_ptr.vmem [resolvable:$true] %s51
      %57 = dma.hbm_to_vmem [thread:$0]  %s5, 1024, %s52, [#allocation5], 64, 64, 4
    $region25: #{fc_actor_forward.1} parent=1 // pred_fallthru
      _
    // Predicated region
    $region26: #{fc_actor_forward.1} parent=1 // pred_check
      _
    $region27: #{fc_actor_forward.1} parent=1 // pred_check_branch
      %59 = sbr.rel (0) target = $region29
    $region28: #{fc_actor_forward.1} parent=1 // pred_region
      %s61 = ssub.s32 16, 16
      %62 = vsyncadd [#allocation8], %s61
      %s64 = sshll.u32 [#allocation7], 4
      %s65 = int_to_ptr.vmem [resolvable:$true] %s64
      %67 = dma.hbm_to_vmem [thread:$0]  %s6, 16, %s65, [#allocation8]
    $region29: #{fc_actor_forward.1} parent=1 // pred_fallthru
      _
    // Predicated region
    $region30: #{fc_actor_forward.1} parent=1 // pred_check
      _
    $region31: #{fc_actor_forward.1} parent=1 // pred_check_branch
      %69 = sbr.rel (0) target = $region33
    $region32: #{fc_actor_forward.1} parent=1 // pred_region
      %s71 = ssub.s32 1024, 1024
      %72 = vsyncadd [#allocation8], %s71
      %s73 = sshll.u32 [#allocation9], 4
      %s74 = int_to_ptr.vmem [resolvable:$true] %s73
      %79 = dma.hbm_to_vmem [thread:$0]  %s7, 1024, %s74, [#allocation8], 64, 64, 4
    $region33: #{fc_actor_forward.1} parent=1 // pred_fallthru
      _
    // Predicated region
    $region34: #{fc_actor_forward.1} parent=1 // pred_check
      _
    $region35: #{fc_actor_forward.1} parent=1 // pred_check_branch
      %81 = sbr.rel (0) target = $region37
    $region36: #{fc_actor_forward.1} parent=1 // pred_region
      %s83 = ssub.s32 16, 16
      %84 = vsyncadd [#allocation11], %s83
      %s86 = sshll.u32 [#allocation10], 4
      %s87 = int_to_ptr.vmem [resolvable:$true] %s86
      %89 = dma.hbm_to_vmem [thread:$0]  %s8, 16, %s87, [#allocation11]
    $region37: #{fc_actor_forward.1} parent=1 // pred_fallthru
      _
    // Predicated region
    $region38: #{fc_actor_forward.1} parent=1 // pred_check
      _
    $region39: #{fc_actor_forward.1} parent=1 // pred_check_branch
      %91 = sbr.rel (0) target = $region41
    $region40: #{fc_actor_forward.1} parent=1 // pred_region
      %92 = dma.done [#allocation3], 128
    $region41: #{fc_actor_forward.1} parent=1 // pred_fallthru
      _
    // Predicated region
    $region42: #{fc_actor_forward.1} parent=1 // pred_check
      _
    $region43: #{fc_actor_forward.1} parent=1 // pred_check_branch
      %94 = sbr.rel (0) target = $region45
    $region44: #{fc_actor_forward.1} parent=1 // pred_region
      %95 = dma.done [#allocation5], 1024
    $region45: #{fc_actor_forward.1} parent=1 // pred_fallthru
      _
    // Predicated region
    $region46: #{fc_actor_forward.1} parent=1 // pred_check
      _
    $region47: #{fc_actor_forward.1} parent=1 // pred_check_branch
      %97 = sbr.rel (0) target = $region49
    $region48: #{fc_actor_forward.1} parent=1 // pred_region
      %98 = dma.done [#allocation5], 1024
    $region49: #{fc_actor_forward.1} parent=1 // pred_fallthru
      _
    // Predicated region
    $region50: #{fc_actor_forward.1} parent=1 // pred_check
      _
    $region51: #{fc_actor_forward.1} parent=1 // pred_check_branch
      %100 = sbr.rel (0) target = $region53
    $region52: #{fc_actor_forward.1} parent=1 // pred_region
      %101 = dma.done [#allocation8], 16
    $region53: #{fc_actor_forward.1} parent=1 // pred_fallthru
      _
    // Predicated region
    $region54: #{fc_actor_forward.1} parent=1 // pred_check
      _
    $region55: #{fc_actor_forward.1} parent=1 // pred_check_branch
      %103 = sbr.rel (0) target = $region57
    $region56: #{fc_actor_forward.1} parent=1 // pred_region
      %104 = dma.done [#allocation8], 1024
    $region57: #{fc_actor_forward.1} parent=1 // pred_fallthru
      _
    // Predicated region
    $region58: #{fc_actor_forward.1} parent=1 // pred_check
      _
    $region59: #{fc_actor_forward.1} parent=1 // pred_check_branch
      %106 = sbr.rel (0) target = $region61
    $region60: #{fc_actor_forward.1} parent=1 // pred_region
      %107 = dma.done [#allocation11], 16
    $region61: #{fc_actor_forward.1} parent=1 // pred_fallthru
      _
    %v109 = vld [vmem:[#allocation2] sm:$0xff]
    %v110 = vpack.c.bf16 %v109, %v109
    %v111 = vld [vmem:[%s1] sm:$0xf]
    %v112 = vld [vmem:[%s1 + $0x4] sm:$0xf]
    %v113 = vld [vmem:[%s1 + $0x8] sm:$0xf]
    %v114 = vld [vmem:[%s1 + $0xc] sm:$0xf]
    %v115 = vld [vmem:[%s2] sm:$0x1]
    %v117 = vlaneseq
    %v118 = vshrl.u32 %v117, 7
    %v119 = vsub.s32 0, %v118
    %v120 = vrot.slane %v115, %v119
    %v126 = vunpack.c.l.b16 %v111
    %v127 = vunpack.c.l.b16 %v112
    %v128 = vunpack.c.l.b16 %v113
    %v129 = vunpack.c.l.b16 %v114
    %v130 = vpack.c.b16 %v127, %v126
    %v131 = vpack.c.b16 %v129, %v128
    %vm134 = vcmask 261120
    %v136 = vsel %vm134, %v110, 0
    %138 = vmatprep.subr.bf16.mxu0 0
    %139 = vmatpush1.bf16.msra.mxu0 %v130
    %140 = vmatprep.subr.bf16.mxu0 0
    %141 = vmatpush1.bf16.msra.mxu0 %v131
    %142 = vmatprep.subr.bf16.mxu0 0
    %143 = vmatpush1.bf16.msra.mxu0 0
    %144 = vmatprep.subr.bf16.mxu0 0
    %145 = vmatpush1.bf16.msra.mxu0 0
    %146 = vmatprep.subr.bf16.mxu0 0
    %147 = vmatpush1.bf16.msra.mxu0 0
    %148 = vmatprep.subr.bf16.mxu0 0
    %149 = vmatpush1.bf16.msra.mxu0 0
    %150 = vmatprep.subr.bf16.mxu0 0
    %151 = vmatpush1.bf16.msra.mxu0 0
    %152 = vmatprep.subr.bf16.mxu0 0
    %153 = vmatpush1.bf16.msra.mxu0 0
    %154 = vmatprep.subr.bf16.mxu0 0
    %155 = vmatpush1.bf16.msra.mxu0 0
    %156 = vmatprep.subr.bf16.mxu0 0
    %157 = vmatpush1.bf16.msra.mxu0 0
    %158 = vmatprep.subr.bf16.mxu0 0
    %159 = vmatpush1.bf16.msra.mxu0 0
    %160 = vmatprep.subr.bf16.mxu0 0
    %161 = vmatpush1.bf16.msra.mxu0 0
    %162 = vmatprep.subr.bf16.mxu0 0
    %163 = vmatpush1.bf16.msra.mxu0 0
    %164 = vmatprep.subr.bf16.mxu0 0
    %165 = vmatpush1.bf16.msra.mxu0 0
    %166 = vmatprep.subr.bf16.mxu0 0
    %167 = vmatpush1.bf16.msra.mxu0 0
    %168 = vmatprep.subr.bf16.mxu0 0
    %169 = vmatpush1.bf16.msra.mxu0 0
    %170 = vmatprep.mubr.bf16.mxu0 0
    %171 = vmatmul.mubr.bf16.gmra.mrb[0].mxu0 %v136
    %v172 = vpop.f32.mrb[0].mxu0
    %v173 = vadd.f32 %v120, %v172
    %v174 = vpop.f32.mrb[0].mxu0
    %v175 = vpop.f32.mrb[0].mxu0
    %v176 = vpop.f32.mrb[0].mxu0
    %177 = vdwg.mxu0
    %v178 = vmax.f32 %v173, 0.0
    %v179 = vpack.c.bf16 %v178, %v178
    %v180 = vld [vmem:[#allocation4] sm:$0xf]
    %v181 = vld [vmem:[#allocation4 + $0x4] sm:$0xf]
    %v182 = vld [vmem:[#allocation4 + $0x8] sm:$0xf]
    %v183 = vld [vmem:[#allocation4 + $0xc] sm:$0xf]
    %v184 = vld [vmem:[#allocation4 + $0x10] sm:$0xf]
    %v185 = vld [vmem:[#allocation4 + $0x14] sm:$0xf]
    %v186 = vld [vmem:[#allocation4 + $0x18] sm:$0xf]
    %v187 = vld [vmem:[#allocation4 + $0x1c] sm:$0xf]
    %v188 = vld [vmem:[#allocation4 + $0x20] sm:$0xf]
    %v189 = vld [vmem:[#allocation4 + $0x24] sm:$0xf]
    %v190 = vld [vmem:[#allocation4 + $0x28] sm:$0xf]
    %v191 = vld [vmem:[#allocation4 + $0x2c] sm:$0xf]
    %v192 = vld [vmem:[#allocation4 + $0x30] sm:$0xf]
    %v193 = vld [vmem:[#allocation4 + $0x34] sm:$0xf]
    %v194 = vld [vmem:[#allocation4 + $0x38] sm:$0xf]
    %v195 = vld [vmem:[#allocation4 + $0x3c] sm:$0xf]
    %v196 = vld [vmem:[%s4] sm:$0x1]
    %v198 = vlaneseq
    %v199 = vshrl.u32 %v198, 7
    %v200 = vsub.s32 0, %v199
    %v201 = vrot.slane %v196, %v200
    %v219 = vunpack.c.l.b16 %v180
    %v220 = vunpack.c.l.b16 %v181
    %v221 = vunpack.c.l.b16 %v182
    %v222 = vunpack.c.l.b16 %v183
    %v223 = vunpack.c.l.b16 %v184
    %v224 = vunpack.c.l.b16 %v185
    %v225 = vunpack.c.l.b16 %v186
    %v226 = vunpack.c.l.b16 %v187
    %v227 = vunpack.c.l.b16 %v188
    %v228 = vunpack.c.l.b16 %v189
    %v229 = vunpack.c.l.b16 %v190
    %v230 = vunpack.c.l.b16 %v191
    %v231 = vunpack.c.l.b16 %v192
    %v232 = vunpack.c.l.b16 %v193
    %v233 = vunpack.c.l.b16 %v194
    %v234 = vunpack.c.l.b16 %v195
    %v235 = vpack.c.b16 %v220, %v219
    %v236 = vpack.c.b16 %v222, %v221
    %v237 = vpack.c.b16 %v224, %v223
    %v238 = vpack.c.b16 %v226, %v225
    %v239 = vpack.c.b16 %v228, %v227
    %v240 = vpack.c.b16 %v230, %v229
    %v241 = vpack.c.b16 %v232, %v231
    %v242 = vpack.c.b16 %v234, %v233
    %251 = vmatprep.subr.bf16.mxu0 0
    %252 = vmatpush1.bf16.msra.mxu0 %v235
    %253 = vmatprep.subr.bf16.mxu0 0
    %254 = vmatpush1.bf16.msra.mxu0 %v236
    %255 = vmatprep.subr.bf16.mxu0 0
    %256 = vmatpush1.bf16.msra.mxu0 %v237
    %257 = vmatprep.subr.bf16.mxu0 0
    %258 = vmatpush1.bf16.msra.mxu0 %v238
    %259 = vmatprep.subr.bf16.mxu0 0
    %260 = vmatpush1.bf16.msra.mxu0 %v239
    %261 = vmatprep.subr.bf16.mxu0 0
    %262 = vmatpush1.bf16.msra.mxu0 %v240
    %263 = vmatprep.subr.bf16.mxu0 0
    %264 = vmatpush1.bf16.msra.mxu0 %v241
    %265 = vmatprep.subr.bf16.mxu0 0
    %266 = vmatpush1.bf16.msra.mxu0 %v242
    %267 = vmatprep.subr.bf16.mxu0 0
    %268 = vmatpush1.bf16.msra.mxu0 0
    %269 = vmatprep.subr.bf16.mxu0 0
    %270 = vmatpush1.bf16.msra.mxu0 0
    %271 = vmatprep.subr.bf16.mxu0 0
    %272 = vmatpush1.bf16.msra.mxu0 0
    %273 = vmatprep.subr.bf16.mxu0 0
    %274 = vmatpush1.bf16.msra.mxu0 0
    %275 = vmatprep.subr.bf16.mxu0 0
    %276 = vmatpush1.bf16.msra.mxu0 0
    %277 = vmatprep.subr.bf16.mxu0 0
    %278 = vmatpush1.bf16.msra.mxu0 0
    %279 = vmatprep.subr.bf16.mxu0 0
    %280 = vmatpush1.bf16.msra.mxu0 0
    %281 = vmatprep.subr.bf16.mxu0 0
    %282 = vmatpush1.bf16.msra.mxu0 0
    %283 = vmatprep.mubr.bf16.mxu0 0
    %284 = vmatmul.mubr.bf16.gmra.mrb[0].mxu0 %v179
    %v285 = vpop.f32.mrb[0].mxu0
    %v286 = vadd.f32 %v201, %v285
    %v287 = vpop.f32.mrb[0].mxu0
    %v288 = vpop.f32.mrb[0].mxu0
    %v289 = vpop.f32.mrb[0].mxu0
    %290 = vdwg.mxu0
    %v291 = vmax.f32 %v286, 0.0
    %v292 = vpack.c.bf16 %v291, %v291
    %v293 = vld [vmem:[#allocation6] sm:$0xf]
    %v294 = vld [vmem:[#allocation6 + $0x4] sm:$0xf]
    %v295 = vld [vmem:[#allocation6 + $0x8] sm:$0xf]
    %v296 = vld [vmem:[#allocation6 + $0xc] sm:$0xf]
    %v297 = vld [vmem:[#allocation6 + $0x10] sm:$0xf]
    %v298 = vld [vmem:[#allocation6 + $0x14] sm:$0xf]
    %v299 = vld [vmem:[#allocation6 + $0x18] sm:$0xf]
    %v300 = vld [vmem:[#allocation6 + $0x1c] sm:$0xf]
    %v301 = vld [vmem:[#allocation6 + $0x20] sm:$0xf]
    %v302 = vld [vmem:[#allocation6 + $0x24] sm:$0xf]
    %v303 = vld [vmem:[#allocation6 + $0x28] sm:$0xf]
    %v304 = vld [vmem:[#allocation6 + $0x2c] sm:$0xf]
    %v305 = vld [vmem:[#allocation6 + $0x30] sm:$0xf]
    %v306 = vld [vmem:[#allocation6 + $0x34] sm:$0xf]
    %v307 = vld [vmem:[#allocation6 + $0x38] sm:$0xf]
    %v308 = vld [vmem:[#allocation6 + $0x3c] sm:$0xf]
    %v309 = vld [vmem:[#allocation7] sm:$0x1]
    %v311 = vlaneseq
    %v312 = vshrl.u32 %v311, 7
    %v313 = vsub.s32 0, %v312
    %v314 = vrot.slane %v309, %v313
    %v332 = vunpack.c.l.b16 %v293
    %v333 = vunpack.c.l.b16 %v294
    %v334 = vunpack.c.l.b16 %v295
    %v335 = vunpack.c.l.b16 %v296
    %v336 = vunpack.c.l.b16 %v297
    %v337 = vunpack.c.l.b16 %v298
    %v338 = vunpack.c.l.b16 %v299
    %v339 = vunpack.c.l.b16 %v300
    %v340 = vunpack.c.l.b16 %v301
    %v341 = vunpack.c.l.b16 %v302
    %v342 = vunpack.c.l.b16 %v303
    %v343 = vunpack.c.l.b16 %v304
    %v344 = vunpack.c.l.b16 %v305
    %v345 = vunpack.c.l.b16 %v306
    %v346 = vunpack.c.l.b16 %v307
    %v347 = vunpack.c.l.b16 %v308
    %v348 = vpack.c.b16 %v333, %v332
    %v349 = vpack.c.b16 %v335, %v334
    %v350 = vpack.c.b16 %v337, %v336
    %v351 = vpack.c.b16 %v339, %v338
    %v352 = vpack.c.b16 %v341, %v340
    %v353 = vpack.c.b16 %v343, %v342
    %v354 = vpack.c.b16 %v345, %v344
    %v355 = vpack.c.b16 %v347, %v346
    %364 = vmatprep.subr.bf16.mxu0 0
    %365 = vmatpush1.bf16.msra.mxu0 %v348
    %366 = vmatprep.subr.bf16.mxu0 0
    %367 = vmatpush1.bf16.msra.mxu0 %v349
    %368 = vmatprep.subr.bf16.mxu0 0
    %369 = vmatpush1.bf16.msra.mxu0 %v350
    %370 = vmatprep.subr.bf16.mxu0 0
    %371 = vmatpush1.bf16.msra.mxu0 %v351
    %372 = vmatprep.subr.bf16.mxu0 0
    %373 = vmatpush1.bf16.msra.mxu0 %v352
    %374 = vmatprep.subr.bf16.mxu0 0
    %375 = vmatpush1.bf16.msra.mxu0 %v353
    %376 = vmatprep.subr.bf16.mxu0 0
    %377 = vmatpush1.bf16.msra.mxu0 %v354
    %378 = vmatprep.subr.bf16.mxu0 0
    %379 = vmatpush1.bf16.msra.mxu0 %v355
    %380 = vmatprep.subr.bf16.mxu0 0
    %381 = vmatpush1.bf16.msra.mxu0 0
    %382 = vmatprep.subr.bf16.mxu0 0
    %383 = vmatpush1.bf16.msra.mxu0 0
    %384 = vmatprep.subr.bf16.mxu0 0
    %385 = vmatpush1.bf16.msra.mxu0 0
    %386 = vmatprep.subr.bf16.mxu0 0
    %387 = vmatpush1.bf16.msra.mxu0 0
    %388 = vmatprep.subr.bf16.mxu0 0
    %389 = vmatpush1.bf16.msra.mxu0 0
    %390 = vmatprep.subr.bf16.mxu0 0
    %391 = vmatpush1.bf16.msra.mxu0 0
    %392 = vmatprep.subr.bf16.mxu0 0
    %393 = vmatpush1.bf16.msra.mxu0 0
    %394 = vmatprep.subr.bf16.mxu0 0
    %395 = vmatpush1.bf16.msra.mxu0 0
    %396 = vmatprep.mubr.bf16.mxu0 0
    %397 = vmatmul.mubr.bf16.gmra.mrb[0].mxu0 %v292
    %v398 = vpop.f32.mrb[0].mxu0
    %v399 = vadd.f32 %v314, %v398
    %v400 = vpop.f32.mrb[0].mxu0
    %v401 = vpop.f32.mrb[0].mxu0
    %v402 = vpop.f32.mrb[0].mxu0
    %403 = vdwg.mxu0
    %v404 = vmax.f32 %v399, 0.0
    %v405 = vpack.c.bf16 %v404, %v404
    %v406 = vld [vmem:[#allocation9] sm:$0xf]
    %v407 = vld [vmem:[#allocation9 + $0x4] sm:$0xf]
    %v408 = vld [vmem:[#allocation9 + $0x8] sm:$0xf]
    %v409 = vld [vmem:[#allocation9 + $0xc] sm:$0xf]
    %v410 = vld [vmem:[#allocation9 + $0x10] sm:$0xf]
    %v411 = vld [vmem:[#allocation9 + $0x14] sm:$0xf]
    %v412 = vld [vmem:[#allocation9 + $0x18] sm:$0xf]
    %v413 = vld [vmem:[#allocation9 + $0x1c] sm:$0xf]
    %v414 = vld [vmem:[#allocation9 + $0x20] sm:$0xf]
    %v415 = vld [vmem:[#allocation9 + $0x24] sm:$0xf]
    %v416 = vld [vmem:[#allocation9 + $0x28] sm:$0xf]
    %v417 = vld [vmem:[#allocation9 + $0x2c] sm:$0xf]
    %v418 = vld [vmem:[#allocation9 + $0x30] sm:$0xf]
    %v419 = vld [vmem:[#allocation9 + $0x34] sm:$0xf]
    %v420 = vld [vmem:[#allocation9 + $0x38] sm:$0xf]
    %v421 = vld [vmem:[#allocation9 + $0x3c] sm:$0xf]
    %v422 = vld [vmem:[#allocation10] sm:$0x1]
    %v424 = vlaneseq
    %v425 = vshrl.u32 %v424, 7
    %v426 = vsub.s32 0, %v425
    %v427 = vrot.slane %v422, %v426
    %v445 = vunpack.c.l.b16 %v406
    %v446 = vunpack.c.l.b16 %v407
    %v447 = vunpack.c.l.b16 %v408
    %v448 = vunpack.c.l.b16 %v409
    %v449 = vunpack.c.l.b16 %v410
    %v450 = vunpack.c.l.b16 %v411
    %v451 = vunpack.c.l.b16 %v412
    %v452 = vunpack.c.l.b16 %v413
    %v453 = vunpack.c.l.b16 %v414
    %v454 = vunpack.c.l.b16 %v415
    %v455 = vunpack.c.l.b16 %v416
    %v456 = vunpack.c.l.b16 %v417
    %v457 = vunpack.c.l.b16 %v418
    %v458 = vunpack.c.l.b16 %v419
    %v459 = vunpack.c.l.b16 %v420
    %v460 = vunpack.c.l.b16 %v421
    %v461 = vpack.c.b16 %v446, %v445
    %v462 = vpack.c.b16 %v448, %v447
    %v463 = vpack.c.b16 %v450, %v449
    %v464 = vpack.c.b16 %v452, %v451
    %v465 = vpack.c.b16 %v454, %v453
    %v466 = vpack.c.b16 %v456, %v455
    %v467 = vpack.c.b16 %v458, %v457
    %v468 = vpack.c.b16 %v460, %v459
    %477 = vmatprep.subr.bf16.mxu0 0
    %478 = vmatpush1.bf16.msra.mxu0 %v461
    %479 = vmatprep.subr.bf16.mxu0 0
    %480 = vmatpush1.bf16.msra.mxu0 %v462
    %481 = vmatprep.subr.bf16.mxu0 0
    %482 = vmatpush1.bf16.msra.mxu0 %v463
    %483 = vmatprep.subr.bf16.mxu0 0
    %484 = vmatpush1.bf16.msra.mxu0 %v464
    %485 = vmatprep.subr.bf16.mxu0 0
    %486 = vmatpush1.bf16.msra.mxu0 %v465
    %487 = vmatprep.subr.bf16.mxu0 0
    %488 = vmatpush1.bf16.msra.mxu0 %v466
    %489 = vmatprep.subr.bf16.mxu0 0
    %490 = vmatpush1.bf16.msra.mxu0 %v467
    %491 = vmatprep.subr.bf16.mxu0 0
    %492 = vmatpush1.bf16.msra.mxu0 %v468
    %493 = vmatprep.subr.bf16.mxu0 0
    %494 = vmatpush1.bf16.msra.mxu0 0
    %495 = vmatprep.subr.bf16.mxu0 0
    %496 = vmatpush1.bf16.msra.mxu0 0
    %497 = vmatprep.subr.bf16.mxu0 0
    %498 = vmatpush1.bf16.msra.mxu0 0
    %499 = vmatprep.subr.bf16.mxu0 0
    %500 = vmatpush1.bf16.msra.mxu0 0
    %501 = vmatprep.subr.bf16.mxu0 0
    %502 = vmatpush1.bf16.msra.mxu0 0
    %503 = vmatprep.subr.bf16.mxu0 0
    %504 = vmatpush1.bf16.msra.mxu0 0
    %505 = vmatprep.subr.bf16.mxu0 0
    %506 = vmatpush1.bf16.msra.mxu0 0
    %507 = vmatprep.subr.bf16.mxu0 0
    %508 = vmatpush1.bf16.msra.mxu0 0
    %509 = vmatprep.mubr.bf16.mxu0 0
    %510 = vmatmul.mubr.bf16.gmra.mrb[0].mxu0 %v405
    %v511 = vpop.f32.mrb[0].mxu0
    %v512 = vadd.f32 %v427, %v511
    %v513 = vpop.f32.mrb[0].mxu0
    %v514 = vpop.f32.mrb[0].mxu0
    %v515 = vpop.f32.mrb[0].mxu0
    %516 = vdwg.mxu0
    %v517 = vtanh.pop %v512
    %v518 = vpack.c.bf16 %v517, %v517
    %519 = vst [vmem:[%s9] sm:$0xf] %v518
    // Predicated region
    $region62: #{fc_actor_forward.1} parent=1 // pred_check
      _
    $region63: #{fc_actor_forward.1} parent=1 // pred_check_branch
      %521 = sbr.rel (0) target = $region65
    $region64: #{fc_actor_forward.1} parent=1 // pred_region
      _
    $region65: #{fc_actor_forward.1} parent=1 // pred_fallthru
      _
    // Predicated region
    $region66: #{fc_actor_forward.1} parent=1 // pred_check
      _
    $region67: #{fc_actor_forward.1} parent=1 // pred_check_branch
      %523 = sbr.rel (0) target = $region69
    $region68: #{fc_actor_forward.1} parent=1 // pred_region
      _
    $region69: #{fc_actor_forward.1} parent=1 // pred_fallthru
      _
    %524 = vsyncpa [#allocation3], 1
    %525 = vsyncpa [#allocation5], 1
    %526 = vsyncpa [#allocation8], 1
    %527 = vsyncpa [#allocation11], 1

</llo_original>
